<compile_context>
chip_gen: v7x
topology: tpu7x:2x2x1
jax: 0.10.0
libtpu: 0.0.40
codegen_flags: <defaults>
</compile_context>

<pallas_src>
import functools

import jax
import jax.numpy as jnp
from jax import lax
from jax.experimental import pallas as pl
from jax.experimental.pallas import tpu as pltpu


def _laplacian_loss_kernel(cmask_ref, p_ref, g_ref, pn_ref, gn_ref,
                           out_ref, acc_ref, *, inv_dx2, h_total, tile_h):
    """One (tile_h, Lw) row tile of the packed field, plus an 8-row halo below."""
    k = pl.program_id(1)
    nk = pl.num_programs(1)

    # Working tile = main rows + lookahead rows.  The lookahead supplies the
    # down-neighbour / g-row for the last rows owned by this tile.
    pw = jnp.concatenate(
        [p_ref[0].astype(jnp.float32), pn_ref[0].astype(jnp.float32)], axis=0)
    gw = jnp.concatenate(
        [g_ref[0].astype(jnp.float32), gn_ref[0].astype(jnp.float32)], axis=0)
    t_rows, lanes = pw.shape

    # 5-point stencil via XLU rolls; wrapped rows/cols are masked out below.
    up = pltpu.roll(pw, 1, axis=0)                  # up[r]    = pw[r-1]
    down = pltpu.roll(pw, t_rows - 1, axis=0)       # down[r]  = pw[r+1]
    left = pltpu.roll(pw, 1, axis=1)                # left[c]  = pw[:, c-1]
    right = pltpu.roll(pw, lanes - 1, axis=1)       # right[c] = pw[:, c+1]

    lap = (up + down + left + right - 4.0 * pw) * inv_dx2
    diff = lap - gw
    sq = diff * diff

    # Validity mask: rows owned by this tile (global interior rows, ragged-aware)
    # x interior columns of each packed W-group.  Built from a (T,1) row mask and
    # the (1,Lw) precomputed column mask; the select also neutralises garbage
    # values read from out-of-bounds ragged-edge rows (they are never valid).
    row_ids = lax.broadcasted_iota(jnp.int32, (t_rows, 1), 0)
    hi = jnp.minimum(tile_h, h_total - 2 - k * tile_h)
    row_ok = (row_ids >= 1) & (row_ids <= hi)        # (T, 1)
    col_ok = cmask_ref[...] > 0.5                    # (1, Lw)
    msq = jnp.where(row_ok & col_ok, sq, 0.0)

    # Defer the cross-lane reduction: per tile only a sublane reduce into a
    # persistent (1, Lw) accumulator; one lane reduce + scalar store at the end.
    partial = jnp.sum(msq, axis=0, keepdims=True)    # (1, Lw)

    @pl.when(k == 0)
    def _():
        acc_ref[...] = jnp.zeros_like(acc_ref)

    acc_ref[...] += partial

    @pl.when(k == nk - 1)
    def _():
        out_ref[0, 0] = jnp.sum(acc_ref[...])


def _choose_pack(B, W):
    """Number of batches interleaved along the lane axis (divisor of B)."""
    if W >= 128 or B <= 1:
        return 1
    best = 1
    for cand in range(1, B + 1):
        if B % cand:
            continue
        if cand * W > 4096:          # keep packed rows (and VMEM temps) bounded
            break
        best = cand
        if cand * W >= 128:          # smallest divisor that fills the lanes
            break
    return best


def _choose_tile_h(H, Lw, itemsize):
    """~512 KiB input blocks (HBM streaming sweet spot), sublane-packing aware."""
    row_mult = 8 if itemsize >= 4 else 16     # f32 -> 8 rows, bf16/f16 -> 16 rows
    target_bytes = 512 * 1024
    t = (target_bytes // max(1, Lw * itemsize)) // row_mult * row_mult
    t = max(row_mult, t)
    if t >= H:
        return H                               # single tile (full-dim block is legal)
    return t


def laplacian_loss(p, g, dx, *, tile_h=None):
    """Pallas equivalent of LaplacianLoss(dx)(p, g).  p, g: (B, H, W)."""
    assert p.shape == g.shape and p.ndim == 3
    B, H, W = p.shape
    assert H >= 3 and W >= 3, "need at least one interior point"

    # --- lane packing (fold batches into the 128-lane axis when W is narrow) ---
    P = _choose_pack(B, W)
    if P > 1:
        def _pack(x):
            return (x.reshape(B // P, P, H, W)
                     .transpose(0, 2, 1, 3)
                     .reshape(B // P, H, P * W))
        p_in, g_in = _pack(p), _pack(g)
    else:
        p_in, g_in = p, g
    NB, Lw = B // P, P * W

    itemsize = p.dtype.itemsize
    if tile_h is None:
        tile_h = _choose_tile_h(H, Lw, itemsize)
    assert tile_h == H or (8 <= tile_h <= H and tile_h % 8 == 0), \
        f"tile_h={tile_h} must be H or a multiple of 8 in [8, H]"

    # Row tiles own global rows [k*tile_h + 1, min((k+1)*tile_h, H-2)].
    nk = pl.cdiv(H - 2, tile_h)

    # 8-row lookahead halo block below each tile (clamped at the bottom edge).
    look_rows = 8 if H >= 8 else H
    hb = max(1, tile_h // look_rows)
    look_clamp = pl.cdiv(H, look_rows) - 1

    def look_map(b, k):
        return (b, jnp.minimum((k + 1) * hb, look_clamp), 0)

    # Interior-column mask per packed lane: 1.0 iff (lane % W) not in {0, W-1}.
    lane = jnp.arange(Lw, dtype=jnp.int32) % W
    cmask = ((lane > 0) & (lane < W - 1)).astype(jnp.float32).reshape(1, Lw)

    inv_dx2 = 1.0 / (float(dx) * float(dx))
    kernel = functools.partial(_laplacian_loss_kernel, inv_dx2=inv_dx2,
                               h_total=H, tile_h=tile_h)

    # VMEM-capacity-aware limit (v7x has only 64 MiB physical).
    try:
        vmem_cap = int(pltpu.get_tpu_info().vmem_capacity_bytes)
    except Exception:
        vmem_cap = 64 * 1024 * 1024
    vmem_limit = min(vmem_cap * 3 // 4, 96 * 1024 * 1024)

    cost = pl.CostEstimate(
        flops=int(10 * B * (H - 2) * (W - 2)),
        transcendentals=0,
        bytes_accessed=int(2 * B * H * W * itemsize + NB * 4),
    )

    partials = pl.pallas_call(
        kernel,
        out_shape=jax.ShapeDtypeStruct((NB, 1), jnp.float32),
        grid_spec=pltpu.PrefetchScalarGridSpec(
            num_scalar_prefetch=0,
            grid=(NB, nk),
            in_specs=[
                pl.BlockSpec((1, Lw), lambda b, k: (0, 0)),               # col mask
                pl.BlockSpec((1, tile_h, Lw), lambda b, k: (b, k, 0)),    # p main
                pl.BlockSpec((1, tile_h, Lw), lambda b, k: (b, k, 0)),    # g main
                pl.BlockSpec((1, look_rows, Lw), look_map),               # p halo
                pl.BlockSpec((1, look_rows, Lw), look_map),               # g halo
            ],
            out_specs=pl.BlockSpec((1, 1), lambda b, k: (b, 0),
                                   memory_space=pltpu.SMEM),
            scratch_shapes=[pltpu.VMEM((1, Lw), jnp.float32)],            # acc
        ),
        compiler_params=pltpu.CompilerParams(
            dimension_semantics=("parallel", "arbitrary"),
            vmem_limit_bytes=vmem_limit,
        ),
        cost_estimate=cost,
    )(cmask, p_in, g_in, p_in, g_in)

    n_interior = float(B) * (H - 2) * (W - 2)          # MSE denominator
    scale = float(W) ** 2 * float(H) ** 2              # p.shape[-1]**2 * p.shape[-2]**2
    return jnp.sum(partials) * (scale / n_interior)


def _reference(p, g, dx):
    p = p.astype(jnp.float32)
    g = g.astype(jnp.float32)
    lap = (p[:, 2:, 1:-1] - 2.0 * p[:, 1:-1, 1:-1] + p[:, :-2, 1:-1]) / dx ** 2 \
        + (p[:, 1:-1, 2:] - 2.0 * p[:, 1:-1, 1:-1] + p[:, 1:-1, :-2]) / dx ** 2
    mse = jnp.mean((lap - g[:, 1:-1, 1:-1]) ** 2)
    return mse * p.shape[-1] ** 2 * p.shape[-2] ** 2


if __name__ == "__main__":
    key = jax.random.PRNGKey(0)
    k1, k2, k3, k4 = jax.random.split(key, 4)
    dx = 0.1

    # Case 1: default path (batches lane-packed, single row tile).
    B, H, W = 2, 16, 16
    p = jax.random.normal(k1, (B, H, W), dtype=jnp.float32)
    g = jax.random.normal(k2, (B, H, W), dtype=jnp.float32)
    ref = jax.block_until_ready(_reference(p, g, dx))
    out = jax.block_until_ready(laplacian_loss(p, g, dx))
    assert jnp.allclose(out, ref, rtol=5e-4, atol=1e-2), (out, ref)

    # Case 2: multi-row-tile path (exercises the 8-row halo / accumulator).
    out_tiled = jax.block_until_ready(laplacian_loss(p, g, dx, tile_h=8))
    assert jnp.allclose(out_tiled, ref, rtol=5e-4, atol=1e-2), (out_tiled, ref)

    # Case 3: ragged last tile (H % tile_h != 0) + odd batch packing.
    B2, H2, W2 = 3, 20, 16
    p2 = jax.random.normal(k3, (B2, H2, W2), dtype=jnp.float32)
    g2 = jax.random.normal(k4, (B2, H2, W2), dtype=jnp.float32)
    ref2 = jax.block_until_ready(_reference(p2, g2, dx))
    out2 = jax.block_until_ready(laplacian_loss(p2, g2, dx, tile_h=8))
    assert jnp.allclose(out2, ref2, rtol=5e-4, atol=1e-2), (out2, ref2)

    print("KERNEL_OK")
</pallas_src>

<mosaic_0001>
module attributes {stable_mosaic.version = 11 : i64} {
  func.func @_laplacian_loss_kernel(%arg0: i32, %arg1: i32, %arg2: memref<1x32xf32, #tpu.memory_space<vmem>>, %arg3: memref<1x16x32xf32, #tpu.memory_space<vmem>>, %arg4: memref<1x16x32xf32, #tpu.memory_space<vmem>>, %arg5: memref<1x8x32xf32, #tpu.memory_space<vmem>>, %arg6: memref<1x8x32xf32, #tpu.memory_space<vmem>>, %arg7: memref<1x1xf32, #tpu.memory_space<smem>>, %arg8: memref<1x32xf32, #tpu.memory_space<vmem>>) attributes {dimension_semantics = [#tpu.dimension_semantics<parallel>, #tpu.dimension_semantics<arbitrary>], iteration_bounds = array<i64: 1, 1>, scalar_prefetch = 0 : i64, scratch_operands = 1 : i64, tpu.core_type = #tpu.core_type<tc>, window_params = [{pipeline_mode = #tpu.pipeline_mode<synchronous>, transform_indices = @transform_0, window_bounds = array<i64: 1, 32>}, {transform_indices = @transform_1, window_bounds = array<i64: 1, 16, 32>}, {transform_indices = @transform_2, window_bounds = array<i64: 1, 16, 32>}, {transform_indices = @transform_3, window_bounds = array<i64: 1, 8, 32>}, {transform_indices = @transform_4, window_bounds = array<i64: 1, 8, 32>}, {transform_indices = @transform_5, window_bounds = array<i64: 1, 1>}]} {
    %c0 = arith.constant 0 : index
    %c0_0 = arith.constant 0 : index
    %c0_1 = arith.constant 0 : index
    %0 = vector.load %arg3[%c0, %c0_0, %c0_1] : memref<1x16x32xf32, #tpu.memory_space<vmem>>, vector<1x16x32xf32>
    %1 = vector.shape_cast %0 : vector<1x16x32xf32> to vector<16x32xf32>
    %c0_2 = arith.constant 0 : index
    %c0_3 = arith.constant 0 : index
    %c0_4 = arith.constant 0 : index
    %2 = vector.load %arg5[%c0_2, %c0_3, %c0_4] : memref<1x8x32xf32, #tpu.memory_space<vmem>>, vector<1x8x32xf32>
    %3 = vector.shape_cast %2 : vector<1x8x32xf32> to vector<8x32xf32>
    %4 = tpu.concatenate %1, %3 in 0 : vector<16x32xf32>, vector<8x32xf32> -> vector<24x32xf32>
    %c0_5 = arith.constant 0 : index
    %c0_6 = arith.constant 0 : index
    %c0_7 = arith.constant 0 : index
    %5 = vector.load %arg4[%c0_5, %c0_6, %c0_7] : memref<1x16x32xf32, #tpu.memory_space<vmem>>, vector<1x16x32xf32>
    %6 = vector.shape_cast %5 : vector<1x16x32xf32> to vector<16x32xf32>
    %c0_8 = arith.constant 0 : index
    %c0_9 = arith.constant 0 : index
    %c0_10 = arith.constant 0 : index
    %7 = vector.load %arg6[%c0_8, %c0_9, %c0_10] : memref<1x8x32xf32, #tpu.memory_space<vmem>>, vector<1x8x32xf32>
    %8 = vector.shape_cast %7 : vector<1x8x32xf32> to vector<8x32xf32>
    %9 = tpu.concatenate %6, %8 in 0 : vector<16x32xf32>, vector<8x32xf32> -> vector<24x32xf32>
    %c1_i32 = arith.constant 1 : i32
    %10 = tpu.dynamic_rotate %4 by %c1_i32 dim 0 : vector<24x32xf32>, i32 -> vector<24x32xf32>
    %c23_i32 = arith.constant 23 : i32
    %11 = tpu.dynamic_rotate %4 by %c23_i32 dim 0 : vector<24x32xf32>, i32 -> vector<24x32xf32>
    %c1_i32_11 = arith.constant 1 : i32
    %12 = tpu.dynamic_rotate %4 by %c1_i32_11 dim 1 : vector<24x32xf32>, i32 -> vector<24x32xf32>
    %c31_i32 = arith.constant 31 : i32
    %13 = tpu.dynamic_rotate %4 by %c31_i32 dim 1 : vector<24x32xf32>, i32 -> vector<24x32xf32>
    %14 = arith.addf %10, %11 : vector<24x32xf32>
    %15 = arith.addf %14, %12 : vector<24x32xf32>
    %16 = arith.addf %15, %13 : vector<24x32xf32>
    %cst = arith.constant 4.000000e+00 : f32
    %17 = vector.broadcast %cst : f32 to vector<24x32xf32>
    %18 = arith.mulf %17, %4 : vector<24x32xf32>
    %19 = arith.subf %16, %18 : vector<24x32xf32>
    %cst_12 = arith.constant 1.000000e+02 : f32
    %20 = vector.broadcast %cst_12 : f32 to vector<24x32xf32>
    %21 = arith.mulf %19, %20 : vector<24x32xf32>
    %22 = arith.subf %21, %9 : vector<24x32xf32>
    %23 = arith.mulf %22, %22 : vector<24x32xf32>
    %24 = tpu.iota {dimensions = array<i32: 0>} : vector<24x1xi32>
    %c16_i32 = arith.constant 16 : i32
    %25 = arith.muli %arg1, %c16_i32 : i32
    %c14_i32 = arith.constant 14 : i32
    %26 = arith.subi %c14_i32, %25 : i32
    %c16_i32_13 = arith.constant 16 : i32
    %27 = arith.minsi %c16_i32_13, %26 : i32
    %c1_i32_14 = arith.constant 1 : i32
    %28 = vector.broadcast %c1_i32_14 : i32 to vector<24x1xi32>
    %29 = arith.cmpi sge, %24, %28 : vector<24x1xi32>
    %30 = vector.broadcast %27 : i32 to vector<24x1xi32>
    %31 = arith.cmpi sle, %24, %30 : vector<24x1xi32>
    %32 = arith.andi %29, %31 : vector<24x1xi1>
    %c0_15 = arith.constant 0 : index
    %c0_16 = arith.constant 0 : index
    %33 = vector.load %arg2[%c0_15, %c0_16] : memref<1x32xf32, #tpu.memory_space<vmem>>, vector<1x32xf32>
    %cst_17 = arith.constant 5.000000e-01 : f32
    %34 = vector.broadcast %cst_17 : f32 to vector<1x32xf32>
    %35 = arith.cmpf ogt, %33, %34 : vector<1x32xf32>
    %36 = vector.broadcast %32 : vector<24x1xi1> to vector<24x32xi1>
    %37 = vector.broadcast %35 : vector<1x32xi1> to vector<24x32xi1>
    %38 = arith.andi %36, %37 : vector<24x32xi1>
    %cst_18 = arith.constant 0.000000e+00 : f32
    %39 = vector.broadcast %cst_18 : f32 to vector<24x32xf32>
    %40 = arith.select %38, %23, %39 : vector<24x32xi1>, vector<24x32xf32>
    %cst_19 = arith.constant dense<0.000000e+00> : vector<32xf32>
    %41 = vector.multi_reduction <add>, %40, %cst_19 [0] : vector<24x32xf32> to vector<32xf32>
    %42 = vector.shape_cast %41 : vector<32xf32> to vector<1x32xf32>
    %c0_i32 = arith.constant 0 : i32
    %43 = arith.cmpi eq, %arg1, %c0_i32 : i32
    %44 = arith.extui %43 : i1 to i32
    %c0_i32_20 = arith.constant 0 : i32
    %45 = arith.cmpi ne, %44, %c0_i32_20 : i32
    scf.if %45 {
      %cst_27 = arith.constant 0.000000e+00 : f32
      %52 = vector.broadcast %cst_27 : f32 to vector<1x32xf32>
      %c0_28 = arith.constant 0 : index
      %c0_29 = arith.constant 0 : index
      %53 = vector.load %arg8[%c0_28, %c0_29] : memref<1x32xf32, #tpu.memory_space<vmem>>, vector<1x32xf32>
      tpu.vector_store %arg8[%c0_28, %c0_29], %52 {strides = array<i32>} : memref<1x32xf32, #tpu.memory_space<vmem>>, vector<1x32xf32>,
    } else {
    }
    %c0_21 = arith.constant 0 : index
    %c0_22 = arith.constant 0 : index
    %46 = vector.load %arg8[%c0_21, %c0_22] : memref<1x32xf32, #tpu.memory_space<vmem>>, vector<1x32xf32>
    %47 = arith.addf %46, %42 : vector<1x32xf32>
    %c0_23 = arith.constant 0 : index
    %c0_24 = arith.constant 0 : index
    %48 = vector.load %arg8[%c0_23, %c0_24] : memref<1x32xf32, #tpu.memory_space<vmem>>, vector<1x32xf32>
    tpu.vector_store %arg8[%c0_23, %c0_24], %47 {strides = array<i32>} : memref<1x32xf32, #tpu.memory_space<vmem>>, vector<1x32xf32>,
    %c0_i32_25 = arith.constant 0 : i32
    %49 = arith.cmpi eq, %arg1, %c0_i32_25 : i32
    %50 = arith.extui %49 : i1 to i32
    %c0_i32_26 = arith.constant 0 : i32
    %51 = arith.cmpi ne, %50, %c0_i32_26 : i32
    scf.if %51 {
      %c0_27 = arith.constant 0 : index
      %c0_28 = arith.constant 0 : index
      %52 = vector.load %arg8[%c0_27, %c0_28] : memref<1x32xf32, #tpu.memory_space<vmem>>, vector<1x32xf32>
      %53 = vector.shape_cast %52 : vector<1x32xf32> to vector<1x1x32xf32>
      %cst_29 = arith.constant dense<0.000000e+00> : vector<1xf32>
      %54 = vector.multi_reduction <add>, %53, %cst_29 [1, 2] : vector<1x1x32xf32> to vector<1xf32>
      %55 = vector.shape_cast %54 : vector<1xf32> to vector<1x1x1xf32>
      %56 = vector.extract %55[0, 0, 0] : f32 from vector<1x1x1xf32>
      %c0_30 = arith.constant 0 : index
      %c0_31 = arith.constant 0 : index
      %57 = memref.load %arg7[%c0_30, %c0_31] : memref<1x1xf32, #tpu.memory_space<smem>>
      memref.store %56, %arg7[%c0_30, %c0_31] : memref<1x1xf32, #tpu.memory_space<smem>>
    } else {
    }
    return
  }
  func.func @transform_0(%arg0: i32, %arg1: i32) -> (i32, i32) {
    %c0_i32 = arith.constant 0 : i32
    %c0_i32_0 = arith.constant 0 : i32
    %c0_i32_1 = arith.constant 0 : i32
    return %c0_i32, %c0_i32_0 : i32, i32
  }
  func.func @transform_1(%arg0: i32, %arg1: i32) -> (i32, i32, i32) {
    %c0_i32 = arith.constant 0 : i32
    %c0_i32_0 = arith.constant 0 : i32
    return %arg0, %arg1, %c0_i32 : i32, i32, i32
  }
  func.func @transform_2(%arg0: i32, %arg1: i32) -> (i32, i32, i32) {
    %c0_i32 = arith.constant 0 : i32
    %c0_i32_0 = arith.constant 0 : i32
    return %arg0, %arg1, %c0_i32 : i32, i32, i32
  }
  func.func @transform_3(%arg0: i32, %arg1: i32) -> (i32, i32, i32) {
    %c1_i32 = arith.constant 1 : i32
    %0 = arith.addi %arg1, %c1_i32 : i32
    %c2_i32 = arith.constant 2 : i32
    %1 = arith.muli %0, %c2_i32 : i32
    %c1_i32_0 = arith.constant 1 : i32
    %2 = arith.minsi %1, %c1_i32_0 : i32
    %c0_i32 = arith.constant 0 : i32
    %c0_i32_1 = arith.constant 0 : i32
    return %arg0, %2, %c0_i32 : i32, i32, i32
  }
  func.func @transform_4(%arg0: i32, %arg1: i32) -> (i32, i32, i32) {
    %c1_i32 = arith.constant 1 : i32
    %0 = arith.addi %arg1, %c1_i32 : i32
    %c2_i32 = arith.constant 2 : i32
    %1 = arith.muli %0, %c2_i32 : i32
    %c1_i32_0 = arith.constant 1 : i32
    %2 = arith.minsi %1, %c1_i32_0 : i32
    %c0_i32 = arith.constant 0 : i32
    %c0_i32_1 = arith.constant 0 : i32
    return %arg0, %2, %c0_i32 : i32, i32, i32
  }
  func.func @transform_5(%arg0: i32, %arg1: i32) -> (i32, i32) {
    %c0_i32 = arith.constant 0 : i32
    %c0_i32_0 = arith.constant 0 : i32
    return %arg0, %c0_i32 : i32, i32
  }
}

</mosaic_0001>

<llo_original>
// kernel: tpu_custom_call.1
$region0: #{tpu_custom_call.1}
  #allocation0 [shape = 'u32[]', space=smem, size = 0x4, offset = 0x4, fixed_abs, tag = 'smem constant byte address 0x4 - core index']
  #allocation1 [shape = 'u32[144,128]{1,0:T(1,128)}', space=vmem, size = 0x12000, scoped, tag = 'internal scratch']
  #allocation2 [shape = 'f32[1,32]{1,0:T(1,128)}', space=vmem, size = 0x200, scoped, tag = 'scratch operand']
  %s0 = inlined_call_operand.hbm [shape: f32[1,32], index: 0, kind: input, shape index: {}]
  %s1 = inlined_call_operand.hbm [shape: f32[1,16,32], index: 1, kind: input, shape index: {}]
  %s2 = inlined_call_operand.hbm [shape: f32[1,16,32], index: 2, kind: input, shape index: {}]
  %s3 = inlined_call_operand.hbm [shape: f32[1,16,32], index: 3, kind: input, shape index: {}]
  %s4 = inlined_call_operand.hbm [shape: f32[1,16,32], index: 4, kind: input, shape index: {}]
  %s5 = inlined_call_operand.hbm [shape: f32[1,1], index: 5, kind: output, shape index: {}]
  %s6 = sld [smem:[#allocation0]]
  $region58: #{tpu_custom_call.1} parent=0
    _
  %s8 = ssub.s32 1, %s6
  %s9 = scalar_select 0, %s8, %s6
  $region1: #{tpu_custom_call.1} parent=0
    #allocation3 [shape = 'u8[512]{0}', space=vmem, size = 0x400, scoped, tag = 'input window, operand 0, single buffered']
    #allocation4 [shape = 's32[1]{0}', space=sflag, size = 0x4, scoped, tag = 'scoped memory for tpu_custom_call.1']
    #allocation5 [shape = 's32[1]{0}', space=sflag, size = 0x4, scoped, tag = 'scoped memory for tpu_custom_call.1']
    #allocation6 [shape = 'u8[8192]{0}', space=vmem, size = 0x2000, scoped, tag = 'input window, operand 1, single buffered']
    #allocation7 [shape = 's32[1]{0}', space=sflag, size = 0x4, scoped, tag = 'scoped memory for tpu_custom_call.1']
    #allocation8 [shape = 'u8[8192]{0}', space=vmem, size = 0x2000, scoped, tag = 'input window, operand 2, single buffered']
    #allocation9 [shape = 'u8[4096]{0}', space=vmem, size = 0x1000, scoped, tag = 'input window, operand 3, single buffered']
    #allocation10 [shape = 's32[1]{0}', space=sflag, size = 0x4, scoped, tag = 'scoped memory for tpu_custom_call.1']
    #allocation11 [shape = 'u8[4096]{0}', space=vmem, size = 0x1000, scoped, tag = 'input window, operand 4, single buffered']
    #allocation12 [shape = 'u8[512]{0}', space=smem, size = 0x200, scoped, tag = 'output window, operand 0, single buffered']
    %10 = vsyncpa [#allocation4], 0
    %11 = vsyncpa [#allocation7], 0
    %12 = vsyncpa [#allocation10], 0
    %13 = vsyncpa [#allocation5], 0
    // Predicated region
    $region2: #{tpu_custom_call.1} parent=1 // pred_check
      _
    $region3: #{tpu_custom_call.1} parent=1 // pred_check_branch
      %15 = sbr.rel (0) target = $region5
    $region4: #{tpu_custom_call.1} parent=1 // pred_region
      %s17 = ssub.s32 16, 16
      %18 = vsyncadd [#allocation4], %s17
      %s20 = sshll.u32 [#allocation3], 4
      %s21 = int_to_ptr.vmem [resolvable:$true] %s20
      %23 = dma.hbm_to_vmem [thread:$0]  %s0, 16, %s21, [#allocation4]
    $region5: #{tpu_custom_call.1} parent=1 // pred_fallthru
      _
    // Predicated region
    $region6: #{tpu_custom_call.1} parent=1 // pred_check
      _
    $region7: #{tpu_custom_call.1} parent=1 // pred_check_branch
      %25 = sbr.rel (0) target = $region9
    $region8: #{tpu_custom_call.1} parent=1 // pred_region
      %s27 = ssub.s32 256, 256
      %28 = vsyncadd [#allocation7], %s27
      %s29 = sshll.u32 [#allocation6], 4
      %s30 = int_to_ptr.vmem [resolvable:$true] %s29
      %35 = dma.hbm_to_vmem [thread:$0]  %s1, 256, %s30, [#allocation7], 128, 128, 8
    $region9: #{tpu_custom_call.1} parent=1 // pred_fallthru
      _
    // Predicated region
    $region10: #{tpu_custom_call.1} parent=1 // pred_check
      _
    $region11: #{tpu_custom_call.1} parent=1 // pred_check_branch
      %37 = sbr.rel (0) target = $region13
    $region12: #{tpu_custom_call.1} parent=1 // pred_region
      %s39 = ssub.s32 256, 256
      %40 = vsyncadd [#allocation7], %s39
      %s41 = sshll.u32 [#allocation8], 4
      %s42 = int_to_ptr.vmem [resolvable:$true] %s41
      %47 = dma.hbm_to_vmem [thread:$0]  %s2, 256, %s42, [#allocation7], 128, 128, 8
    $region13: #{tpu_custom_call.1} parent=1 // pred_fallthru
      _
    // Predicated region
    $region14: #{tpu_custom_call.1} parent=1 // pred_check
      _
    $region15: #{tpu_custom_call.1} parent=1 // pred_check_branch
      %49 = sbr.rel (0) target = $region17
    $region16: #{tpu_custom_call.1} parent=1 // pred_region
      %s50 = sadd.s32 0, 1
      %s51 = smul.u32 %s50, 2
      %p52 = scmp.lt.s32.totalorder %s51, 1
      %s53 = scalar_select %p52, %s51, 1
      %s55 = ssub.s32 128, 128
      %56 = vsyncadd [#allocation10], %s55
      %s57 = smul.addr %s53, 128
      %s58 = scalar_lea.hbm %s3, %s57
      %s60 = sshll.u32 [#allocation9], 4
      %s61 = int_to_ptr.vmem [resolvable:$true] %s60
      %63 = dma.hbm_to_vmem [thread:$0]  %s58, 128, %s61, [#allocation10]
    $region17: #{tpu_custom_call.1} parent=1 // pred_fallthru
      _
    // Predicated region
    $region18: #{tpu_custom_call.1} parent=1 // pred_check
      _
    $region19: #{tpu_custom_call.1} parent=1 // pred_check_branch
      %65 = sbr.rel (0) target = $region21
    $region20: #{tpu_custom_call.1} parent=1 // pred_region
      %s66 = sadd.s32 0, 1
      %s67 = smul.u32 %s66, 2
      %p68 = scmp.lt.s32.totalorder %s67, 1
      %s69 = scalar_select %p68, %s67, 1
      %s71 = ssub.s32 128, 128
      %72 = vsyncadd [#allocation10], %s71
      %s73 = smul.addr %s69, 128
      %s74 = scalar_lea.hbm %s4, %s73
      %s76 = sshll.u32 [#allocation11], 4
      %s77 = int_to_ptr.vmem [resolvable:$true] %s76
      %79 = dma.hbm_to_vmem [thread:$0]  %s74, 128, %s77, [#allocation10]
    $region21: #{tpu_custom_call.1} parent=1 // pred_fallthru
      _
    // Predicated region
    $region22: #{tpu_custom_call.1} parent=1 // pred_check
      _
    $region23: #{tpu_custom_call.1} parent=1 // pred_check_branch
      %81 = sbr.rel (0) target = $region25
    $region24: #{tpu_custom_call.1} parent=1 // pred_region
      %82 = dma.done [#allocation4], 16
    $region25: #{tpu_custom_call.1} parent=1 // pred_fallthru
      _
    // Predicated region
    $region26: #{tpu_custom_call.1} parent=1 // pred_check
      _
    $region27: #{tpu_custom_call.1} parent=1 // pred_check_branch
      %84 = sbr.rel (0) target = $region29
    $region28: #{tpu_custom_call.1} parent=1 // pred_region
      %85 = dma.done [#allocation7], 256
    $region29: #{tpu_custom_call.1} parent=1 // pred_fallthru
      _
    // Predicated region
    $region30: #{tpu_custom_call.1} parent=1 // pred_check
      _
    $region31: #{tpu_custom_call.1} parent=1 // pred_check_branch
      %87 = sbr.rel (0) target = $region33
    $region32: #{tpu_custom_call.1} parent=1 // pred_region
      %88 = dma.done [#allocation7], 256
    $region33: #{tpu_custom_call.1} parent=1 // pred_fallthru
      _
    // Predicated region
    $region34: #{tpu_custom_call.1} parent=1 // pred_check
      _
    $region35: #{tpu_custom_call.1} parent=1 // pred_check_branch
      %90 = sbr.rel (0) target = $region37
    $region36: #{tpu_custom_call.1} parent=1 // pred_region
      %91 = dma.done [#allocation10], 128
    $region37: #{tpu_custom_call.1} parent=1 // pred_fallthru
      _
    // Predicated region
    $region38: #{tpu_custom_call.1} parent=1 // pred_check
      _
    $region39: #{tpu_custom_call.1} parent=1 // pred_check_branch
      %93 = sbr.rel (0) target = $region41
    $region40: #{tpu_custom_call.1} parent=1 // pred_region
      %94 = dma.done [#allocation10], 128
    $region41: #{tpu_custom_call.1} parent=1 // pred_fallthru
      _
    %s95 = sadd.s32 0, 1
    %s96 = smul.u32 %s95, 2
    %p97 = scmp.lt.s32.totalorder %s96, 1
    %s98 = scalar_select %p97, %s96, 1
    %s99 = sadd.s32 0, 1
    %s100 = smul.u32 %s99, 2
    %p101 = scmp.lt.s32.totalorder %s100, 1
    %s102 = scalar_select %p101, %s100, 1
    %v103 = vld [vmem:[#allocation6] sm:$0xff]
    %v104 = vld [vmem:[#allocation6 + $0x8] sm:$0xff]
    %v105 = vld [vmem:[#allocation9] sm:$0xff]
    %v106 = vld [vmem:[#allocation8] sm:$0xff]
    %v107 = vld [vmem:[#allocation8 + $0x8] sm:$0xff]
    %v108 = vld [vmem:[#allocation11] sm:$0xff]
    %v109 = vrot.slane %v103, 7
    %v110 = vrot.slane %v104, 7
    %v111 = vrot.slane %v105, 7
    %v112 = vlaneseq
    %v113 = vshrl.u32 %v112, 7
    %vm114 = vcmp.lt.s32.totalorder %v113, 1
    %v115 = vsel %vm114, %v110, %v111
    %v116 = vsel %vm114, %v109, %v110
    %v117 = vsel %vm114, %v111, %v109
    %v118 = vrot.slane %v103, 1
    %v119 = vrot.slane %v104, 1
    %v120 = vrot.slane %v105, 1
    %vm121 = vcmp.lt.s32.totalorder %v113, 7
    %v122 = vsel %vm121, %v119, %v120
    %v123 = vsel %vm121, %v118, %v119
    %v124 = vsel %vm121, %v120, %v118
    %vm125 = vcmask 1047808
    %126 = vrot.lane.b32.xlu0 %v103, 32
    %v127 = vpop.permute.xlu0 %126
    %v128 = vsel %vm125, %v127, %v103
    %129 = vrot.lane.b32.xlu0 %v104, 32
    %v130 = vpop.permute.xlu0 %129
    %v131 = vsel %vm125, %v130, %v104
    %132 = vrot.lane.b32.xlu0 %v105, 32
    %v133 = vpop.permute.xlu0 %132
    %v134 = vsel %vm125, %v133, %v105
    %135 = vrot.lane.b32.xlu0 %v128, 32
    %v136 = vpop.permute.xlu0 %135
    %137 = vrot.lane.b32.xlu0 %v131, 32
    %v138 = vpop.permute.xlu0 %137
    %139 = vrot.lane.b32.xlu0 %v134, 32
    %v140 = vpop.permute.xlu0 %139
    %v141 = vsel %vm125, %v136, %v103
    %v142 = vsel %vm125, %v138, %v104
    %v143 = vsel %vm125, %v140, %v105
    %v144 = vadd.f32 %v117, %v123
    %v145 = vadd.f32 %v116, %v122
    %v146 = vadd.f32 %v115, %v124
    %150 = vrot.lane.b32.xlu0 %v141, 97
    %v151 = vpop.permute.xlu0 %150
    %152 = vrot.lane.b32.xlu0 %v142, 97
    %v153 = vpop.permute.xlu0 %152
    %154 = vrot.lane.b32.xlu0 %v143, 97
    %v155 = vpop.permute.xlu0 %154
    %v159 = vadd.f32 %v144, %v151
    %v160 = vadd.f32 %v145, %v153
    %v161 = vadd.f32 %v146, %v155
    %162 = vrot.lane.b32.xlu0 %v141, 127
    %v163 = vpop.permute.xlu0 %162
    %164 = vrot.lane.b32.xlu0 %v142, 127
    %v165 = vpop.permute.xlu0 %164
    %166 = vrot.lane.b32.xlu0 %v143, 127
    %v167 = vpop.permute.xlu0 %166
    %v171 = vadd.f32 %v159, %v163
    %v172 = vadd.f32 %v160, %v165
    %v173 = vadd.f32 %v161, %v167
    %v174 = vmul.f32 %v103, 4.0
    %v175 = vmul.f32 %v104, 4.0
    %v176 = vmul.f32 %v105, 4.0
    %v177 = vsub.f32 %v171, %v174
    %v178 = vsub.f32 %v172, %v175
    %v179 = vsub.f32 %v173, %v176
    %v180 = vmul.f32 %v177, 100.0
    %v181 = vmul.f32 %v178, 100.0
    %v182 = vmul.f32 %v179, 100.0
    %v183 = vsub.f32 %v180, %v106
    %v184 = vsub.f32 %v181, %v107
    %v185 = vsub.f32 %v182, %v108
    %v186 = vmul.f32 %v183, %v183
    %v187 = vmul.f32 %v184, %v184
    %v188 = vmul.f32 %v185, %v185
    %v189 = vadd.s32 %v113, 8
    %v190 = vadd.s32 %v113, 16
    %s191 = smul.u32 0, 16
    %s192 = ssub.s32 14, %s191
    %p193 = scmp.lt.s32.totalorder %s192, 16
    %s194 = scalar_select %p193, %s192, 16
    %vm195 = vcmp.ge.s32.totalorder %v113, 1
    %vm196 = vcmp.ge.s32.totalorder %v189, 1
    %vm197 = vcmp.ge.s32.totalorder %v190, 1
    %v198 = vstv %s194
    %vm199 = vcmp.le.s32.totalorder %v113, %v198
    %vm200 = vcmp.le.s32.totalorder %v189, %v198
    %vm201 = vcmp.le.s32.totalorder %v190, %v198
    %vm202 = vmand %vm195, %vm199
    %vm203 = vmand %vm196, %vm200
    %vm204 = vmand %vm197, %vm201
    %v205 = vld [vmem:[#allocation3] sm:$0x1]
    %vm206 = vcmp.gt.f32.partialorder %v205, 0.5
    %v207 = vsel %vm202, 1, 0
    %v208 = vsel %vm203, 1, 0
    %v209 = vsel %vm204, 1, 0
    %vm210 = vcmp.eq.s32.totalorder %v207, 1
    %vm211 = vcmp.eq.s32.totalorder %v208, 1
    %vm212 = vcmp.eq.s32.totalorder %v209, 1
    %v213 = vsel %vm206, 1, 0
    %v214 = vlaneseq
    %v215 = vshrl.u32 %v214, 7
    %v216 = vsub.s32 0, %v215
    %v217 = vrot.slane %v213, %v216
    %vm218 = vcmp.eq.s32.totalorder %v217, 1
    %vm219 = vmand %vm210, %vm218
    %vm220 = vmand %vm211, %vm218
    %vm221 = vmand %vm212, %vm218
    %v222 = vsel %vm219, %v186, 0.0
    %v223 = vsel %vm220, %v187, 0.0
    %v224 = vsel %vm221, %v188, 0.0
    %vm225 = vcmask 261120
    %v226 = vsel %vm225, %v222, 0.0
    %v227 = vsel %vm225, %v223, 0.0
    %v228 = vadd.f32 %v226, %v227
    %v229 = vsel %vm225, %v224, 0.0
    %v230 = vadd.f32 %v228, %v229
    %v231 = vrot.slane %v230, 4
    %v232 = vadd.f32 %v230, %v231
    %v233 = vrot.slane %v232, 2
    %v234 = vadd.f32 %v232, %v233
    %v235 = vrot.slane %v234, 1
    %v236 = vadd.f32 %v234, %v235
    %p237 = scmp.eq.s32.totalorder 0, 0
    // Predicated region
    $region42: #{tpu_custom_call.1} parent=1 // pred_check
      %p238 = pneg %p237
    $region43: #{tpu_custom_call.1} parent=1 // pred_check_branch
      %240 = sbr.rel (%p238) target = $region45
    $region44: #{tpu_custom_call.1} parent=1 // pred_region
      %vm241 = vcmask 253952
      %242 = vst.msk [vmem:[#allocation2] sm:$0x1] %vm241, 0.0
    $region45: #{tpu_custom_call.1} parent=1 // pred_fallthru
      _
    %v243 = vld [vmem:[#allocation2] sm:$0x1]
    %v244 = vadd.f32 %v243, %v236
    %vm245 = vcmask 253952
    %246 = vst.msk [vmem:[#allocation2] sm:$0x1] %vm245, %v244
    // Predicated region
    $region46: #{tpu_custom_call.1} parent=1 // pred_check
      %p247 = pneg %p237
    $region47: #{tpu_custom_call.1} parent=1 // pred_check_branch
      %249 = sbr.rel (%p247) target = $region49
    $region48: #{tpu_custom_call.1} parent=1 // pred_region
      %v250 = vld [vmem:[#allocation2] sm:$0x1]
      %v251 = vsel %vm245, %v250, 0.0
      %252 = vadd.xlane.f32.xlu0 %v251
      %v253 = vpop.xlane.xlu0 %252
      %v254 = vrot.slane %v253, 4
      %v255 = vadd.f32 %v253, %v254
      %v256 = vrot.slane %v255, 2
      %v257 = vadd.f32 %v255, %v256
      %v258 = vrot.slane %v257, 1
      %v259 = vadd.f32 %v257, %v258
      %s260 = vtos %v259
      %s261 = scalar_lea.smem [#allocation12], 0
      %262 = sst [smem:[%s261]] %s260
    $region49: #{tpu_custom_call.1} parent=1 // pred_fallthru
      _
    // Predicated region
    $region50: #{tpu_custom_call.1} parent=1 // pred_check
      _
    $region51: #{tpu_custom_call.1} parent=1 // pred_check_branch
      %264 = sbr.rel (0) target = $region53
    $region52: #{tpu_custom_call.1} parent=1 // pred_region
      %s266 = ssub.s32 16, 16
      %267 = vsyncadd [#allocation5], %s266
      %270 = dma.smem_to_hbm [#allocation12], 16, %s5, [#allocation5]
    $region53: #{tpu_custom_call.1} parent=1 // pred_fallthru
      _
    // Predicated region
    $region54: #{tpu_custom_call.1} parent=1 // pred_check
      _
    $region55: #{tpu_custom_call.1} parent=1 // pred_check_branch
      %272 = sbr.rel (0) target = $region57
    $region56: #{tpu_custom_call.1} parent=1 // pred_region
      %273 = dma.done [#allocation5], 16
    $region57: #{tpu_custom_call.1} parent=1 // pred_fallthru
      _
    %274 = sfence
    %275 = vsyncpa [#allocation4], 1
    %276 = vsyncpa [#allocation7], 1
    %277 = vsyncpa [#allocation10], 1
    %278 = vsyncpa [#allocation5], 1

</llo_original>
